<compile_context>
chip_gen: v5e
topology: v5e:2x2
jax: 0.10.0
libtpu: 0.0.40
codegen_flags: <defaults>
</compile_context>

<pallas_src>
import functools
import math

import jax
import jax.numpy as jnp
from jax import lax
from jax.experimental import pallas as pl
from jax.experimental.pallas import tpu as pltpu


# ---------------------------------------------------------------------------
# Kernels
# ---------------------------------------------------------------------------

def _acc_step(x_ref, w_ref, acc_ref, precision):
    """acc[tm, tn] += x[tm, tk] @ w[tk, tn]  (k is the innermost grid axis)."""
    @pl.when(pl.program_id(2) == 0)
    def _():
        acc_ref[...] = jnp.zeros_like(acc_ref)

    x = x_ref[...]
    if x.dtype != w_ref.dtype:
        # Cast activations to the (pre-cast) weight compute dtype inside the
        # kernel: VPU cast hidden under the MXU instead of an extra HBM pass.
        x = x.astype(w_ref.dtype)
    acc_ref[...] += jnp.dot(x, w_ref[...],
                            preferred_element_type=jnp.float32,
                            precision=precision)


def _kernel_direct_bias(x_ref, w_ref, b_ref, o_ref, *, precision):
    # f32 output: accumulate straight into the resident output block.
    _acc_step(x_ref, w_ref, o_ref, precision)

    @pl.when(pl.program_id(2) == pl.num_programs(2) - 1)
    def _():
        o_ref[...] = o_ref[...] + b_ref[...]


def _kernel_direct_nobias(x_ref, w_ref, o_ref, *, precision):
    _acc_step(x_ref, w_ref, o_ref, precision)


def _kernel_scratch_bias(x_ref, w_ref, b_ref, o_ref, acc_ref, *, precision):
    _acc_step(x_ref, w_ref, acc_ref, precision)

    @pl.when(pl.program_id(2) == pl.num_programs(2) - 1)
    def _():
        o_ref[...] = (acc_ref[...] + b_ref[...]).astype(o_ref.dtype)


def _kernel_scratch_nobias(x_ref, w_ref, o_ref, acc_ref, *, precision):
    _acc_step(x_ref, w_ref, acc_ref, precision)

    @pl.when(pl.program_id(2) == pl.num_programs(2) - 1)
    def _():
        o_ref[...] = acc_ref[...].astype(o_ref.dtype)


# ---------------------------------------------------------------------------
# Wrapper helpers
# ---------------------------------------------------------------------------

def _round_up(v, m):
    return -(-v // m) * m


def prepare_weight(weight, compute_dtype=None):
    """One-time transform of the PyTorch-layout [out, in] weight into the
    canonical MXU layout [in, out], with an optional cast (e.g. jnp.bfloat16).
    Call this at parameter-load time so the transpose/cast HBM pass is
    amortized over every forward call."""
    w = jnp.asarray(weight)
    if compute_dtype is not None:
        w = w.astype(compute_dtype)
    return jnp.transpose(w)            # [K, N]


def _device_info():
    kind = ""
    try:
        kind = jax.devices()[0].device_kind.lower()
    except Exception:
        pass
    vmem_cap = 64 << 20                # conservative (v7x-sized) fallback
    try:
        vmem_cap = int(getattr(pltpu.get_tpu_info(),
                               "vmem_capacity_bytes", vmem_cap))
    except Exception:
        pass
    return kind, vmem_cap


def _pick_tiles(M, N, K, x_itemsize, kind):
    # Sub-32-bit dtypes pack 16/32 rows per sublane group.
    row_align = {4: 8, 2: 16, 1: 32}.get(x_itemsize, 8)
    if M <= 64:
        # Decode-like: pure weight streaming (memory-bound).  Modest tiles; HBM
        # saturation comes from buffering depth, not bigger output tiles.
        t_m, t_n, t_k = _round_up(M, row_align), 256, 1024
    elif "v5" in kind:
        # v5e: ~240 flop/B reaches the roofline -> 512x512 output tiles, long K.
        t_m, t_n, t_k = 512, 512, 1024
    else:
        # v6e / v7x (and unknown): 1024-wide output tiles for compute-bound AI.
        t_m, t_n, t_k = 1024, 1024, 1024
    tm = min(t_m, _round_up(M, row_align))
    tn = min(t_n, _round_up(N, 128))
    tk = min(t_k, _round_up(K, 128))

    # v7x has 2 TensorCores: keep at least one parallel grid axis with >=2
    # iterations so both cores get work.
    if "v7" in kind and pl.cdiv(M, tm) == 1 and pl.cdiv(N, tn) == 1 and N > 128:
        tn = min(tn, _round_up(pl.cdiv(N, 2), 128))
    return tm, tn, tk, row_align


def _fit_vmem(tm, tn, tk, x_isz, w_isz, o_isz, direct_acc, budget, row_align):
    """Shrink tiles (tk first, then tn, then tm) until the double-buffered
    working set fits the VMEM budget.  Never triggers with the defaults."""
    def est(tm_, tn_, tk_):
        e = 2 * (tm_ * tk_ * x_isz + tk_ * tn_ * w_isz
                 + tm_ * tn_ * o_isz + tn_ * 4)
        if not direct_acc:
            e += tm_ * tn_ * 4
        return e

    while est(tm, tn, tk) > budget and tk > 128:
        tk = max(128, _round_up(tk // 2, 128))
    while est(tm, tn, tk) > budget and tn > 128:
        tn = max(128, _round_up(tn // 2, 128))
    while est(tm, tn, tk) > budget and tm > row_align:
        tm = max(row_align, _round_up(tm // 2, row_align))
    return tm, tn, tk


def _weight_spec(block_shape, index_map, n_buffers):
    if n_buffers > 2:
        try:
            return pl.BlockSpec(block_shape, index_map,
                                pipeline_mode=pl.Buffered(n_buffers))
        except Exception:   # older jax without pipeline_mode: plain double-buffer
            pass
    return pl.BlockSpec(block_shape, index_map)


# ---------------------------------------------------------------------------
# Public entry point
# ---------------------------------------------------------------------------

def row_parallel_linear(x, weight, bias=None, *, weight_prepared=False,
                        compute_dtype=None, precision=None,
                        tm=None, tn=None, tk=None):
    """Y = X @ W^T (+ bias).

    weight: PyTorch-layout [out_features, in_features], unless
    weight_prepared=True, in which case it is the [in_features, out_features]
    array returned by prepare_weight() (preferred: transpose/cast once at
    parameter-load time, not per call).

    precision: pass lax.Precision.HIGHEST for bit-faithful f32 matmul; default
    uses the MXU's standard f32 path.
    """
    if weight_prepared:
        w_kn = jnp.asarray(weight)                 # [K, N]
    else:
        # NOTE: per-call transpose/cast; amortize it with prepare_weight().
        w_kn = prepare_weight(weight, compute_dtype)
    K, N = w_kn.shape

    *lead, Kx = x.shape
    assert Kx == K, f"in_features mismatch: {Kx} vs {K}"
    M = math.prod(lead) if lead else 1
    out_dtype = x.dtype
    x2 = x.reshape(M, K)

    kind, vmem_cap = _device_info()
    x_isz = jnp.dtype(x2.dtype).itemsize
    w_isz = jnp.dtype(w_kn.dtype).itemsize
    o_isz = jnp.dtype(out_dtype).itemsize
    direct_acc = out_dtype == jnp.float32          # accumulate into o_ref itself

    atm, atn, atk, row_align = _pick_tiles(M, N, K, x_isz, kind)
    tm = atm if tm is None else min(tm, _round_up(M, row_align))
    tn = atn if tn is None else min(tn, _round_up(N, 128))
    tk = atk if tk is None else min(tk, _round_up(K, 128))

    # ~15% headroom under physical VMEM for Mosaic internal scratch/semaphores
    # (generation-aware: ~54 MiB on v7x, ~108 MiB on v5e/v6e).
    vmem_limit = max(32 << 20, int(vmem_cap * 0.85))
    tm, tn, tk = _fit_vmem(tm, tn, tk, x_isz, w_isz, o_isz, direct_acc,
                           int(vmem_limit * 0.9), row_align)

    # Only the contraction axis needs zero padding (garbage there would corrupt
    # valid outputs); M/N edge blocks rely on masked writeback instead of pads.
    Kp = _round_up(K, tk)
    if Kp != K:
        x2 = jnp.pad(x2, ((0, 0), (0, Kp - K)))
        w_kn = jnp.pad(w_kn, ((0, Kp - K), (0, 0)))

    grid = (pl.cdiv(M, tm), pl.cdiv(N, tn), Kp // tk)

    x_spec = pl.BlockSpec((tm, tk), lambda i, j, k: (i, k))
    # Deeper buffering on the streamed weight for decode-like shapes where the
    # weight DMA is the bottleneck (only when there is something to pipeline).
    w_buffers = 3 if (M <= 64 and grid[1] * grid[2] > 2) else 2
    w_spec = _weight_spec((tk, tn), lambda i, j, k: (k, j), w_buffers)
    out_spec = pl.BlockSpec((tm, tn), lambda i, j, k: (i, j))
    scratch = [] if direct_acc else [pltpu.VMEM((tm, tn), jnp.float32)]

    compiler_params = pltpu.CompilerParams(
        dimension_semantics=("parallel", "parallel", "arbitrary"),
        vmem_limit_bytes=vmem_limit,
    )

    if bias is not None:
        b2 = jnp.asarray(bias).astype(jnp.float32).reshape(1, N)
        kernel = functools.partial(
            _kernel_direct_bias if direct_acc else _kernel_scratch_bias,
            precision=precision)
        in_specs = [x_spec, w_spec,
                    pl.BlockSpec((1, tn), lambda i, j, k: (0, j))]
        args = (x2, w_kn, b2)
    else:
        kernel = functools.partial(
            _kernel_direct_nobias if direct_acc else _kernel_scratch_nobias,
            precision=precision)
        in_specs = [x_spec, w_spec]
        args = (x2, w_kn)

    out = pl.pallas_call(
        kernel,
        out_shape=jax.ShapeDtypeStruct((M, N), out_dtype),
        grid_spec=pltpu.PrefetchScalarGridSpec(
            num_scalar_prefetch=0,
            grid=grid,
            in_specs=in_specs,
            out_specs=out_spec,
            scratch_shapes=scratch,
        ),
        compiler_params=compiler_params,
    )(*args)

    return out.reshape(*lead, N)


# ---------------------------------------------------------------------------
# Demo / self-test
# ---------------------------------------------------------------------------

if __name__ == "__main__":
    # Module config (proc_group=None -> world_size=1, single partition).
    in_features = 256
    out_features = 128
    batch, seq = 2, 8

    # Parameters exactly as the module __init__: weight=ones, bias=zeros.
    weight = jnp.ones((out_features, in_features), dtype=jnp.float32)
    bias = jnp.zeros((out_features,), dtype=jnp.float32)
    # One-time weight prep ([K, N] layout), as done at parameter-load time.
    w_prep = prepare_weight(weight)

    key = jax.random.PRNGKey(0)
    x = jax.random.normal(key, (batch, seq, in_features), dtype=jnp.float32)

    y = jax.block_until_ready(
        row_parallel_linear(x, w_prep, bias, weight_prepared=True))
    y_ref = jnp.einsum("bsk,nk->bsn", x, weight) + bias
    assert y.shape == (batch, seq, out_features)
    assert jnp.allclose(y, y_ref, atol=1e-4, rtol=1e-4)

    # Ragged shapes exercise the cdiv / masked-edge-block path (no M/N padding,
    # PyTorch-layout weight prepared inside the call).
    k2, k3 = jax.random.split(key)
    in2, out2 = 384, 200
    w_r = jax.random.normal(k2, (out2, in2), dtype=jnp.float32) * 0.02
    b_r = jax.random.normal(k3, (out2,), dtype=jnp.float32)
    x_r = jax.random.normal(key, (2, 7, in2), dtype=jnp.float32)
    y_r = jax.block_until_ready(row_parallel_linear(x_r, w_r, b_r))
    y_r_ref = jnp.einsum("bsk,nk->bsn", x_r, w_r,
                         precision=lax.Precision.HIGHEST) + b_r
    assert y_r.shape == (2, 7, out2)
    assert jnp.allclose(y_r, y_r_ref, atol=1e-2, rtol=1e-2)

    # bias_term=False path (separate kernel, no fabricated zeros bias).
    y_nb = jax.block_until_ready(
        row_parallel_linear(x, w_prep, None, weight_prepared=True))
    assert jnp.allclose(y_nb, jnp.einsum("bsk,nk->bsn", x, weight),
                        atol=1e-4, rtol=1e-4)

    # bf16 compute path: weight cast + transposed once at load time; f32
    # activations are down-cast inside the kernel; f32 accumulation/output.
    w_r_bf16 = prepare_weight(w_r, jnp.bfloat16)
    y_bf = jax.block_until_ready(
        row_parallel_linear(x_r, w_r_bf16, b_r, weight_prepared=True))
    assert jnp.allclose(y_bf, y_r_ref, atol=5e-2, rtol=5e-2)

    # bf16 activations + bf16 output exercise the scratch-accumulator kernel.
    w_ones_bf16 = prepare_weight(weight, jnp.bfloat16)
    y_b16 = jax.block_until_ready(
        row_parallel_linear(x.astype(jnp.bfloat16), w_ones_bf16, bias,
                            weight_prepared=True))
    assert y_b16.dtype == jnp.bfloat16
    assert jnp.allclose(y_b16.astype(jnp.float32), y_ref, atol=0.3, rtol=0.02)

    print("KERNEL_OK")
</pallas_src>

<mosaic_0001>
module attributes {stable_mosaic.version = 11 : i64} {
  func.func @_kernel_direct_bias(%arg0: i32, %arg1: i32, %arg2: i32, %arg3: memref<16x256xf32, #tpu.memory_space<vmem>>, %arg4: memref<256x128xf32, #tpu.memory_space<vmem>>, %arg5: memref<1x128xf32, #tpu.memory_space<vmem>>, %arg6: memref<16x128xf32, #tpu.memory_space<vmem>>) attributes {dimension_semantics = [#tpu.dimension_semantics<parallel>, #tpu.dimension_semantics<parallel>, #tpu.dimension_semantics<arbitrary>], iteration_bounds = array<i64: 1, 1, 1>, scalar_prefetch = 0 : i64, scratch_operands = 0 : i64, tpu.core_type = #tpu.core_type<tc>, window_params = [{transform_indices = @transform_0, window_bounds = array<i64: 16, 256>}, {transform_indices = @transform_1, window_bounds = array<i64: 256, 128>}, {transform_indices = @transform_2, window_bounds = array<i64: 1, 128>}, {transform_indices = @transform_3, window_bounds = array<i64: 16, 128>}]} {
    %c0_i32 = arith.constant 0 : i32
    %0 = arith.cmpi eq, %arg2, %c0_i32 : i32
    %1 = arith.extui %0 : i1 to i32
    %c0_i32_0 = arith.constant 0 : i32
    %2 = arith.cmpi ne, %1, %c0_i32_0 : i32
    scf.if %2 {
      %cst_10 = arith.constant 0.000000e+00 : f32
      %12 = vector.broadcast %cst_10 : f32 to vector<16x128xf32>
      %c0_11 = arith.constant 0 : index
      %c0_12 = arith.constant 0 : index
      %13 = vector.load %arg6[%c0_11, %c0_12] : memref<16x128xf32, #tpu.memory_space<vmem>>, vector<16x128xf32>
      tpu.vector_store %arg6[%c0_11, %c0_12], %12 {strides = array<i32>} : memref<16x128xf32, #tpu.memory_space<vmem>>, vector<16x128xf32>,
    } else {
    }
    %c0 = arith.constant 0 : index
    %c0_1 = arith.constant 0 : index
    %3 = vector.load %arg3[%c0, %c0_1] : memref<16x256xf32, #tpu.memory_space<vmem>>, vector<16x256xf32>
    %c0_2 = arith.constant 0 : index
    %c0_3 = arith.constant 0 : index
    %4 = vector.load %arg6[%c0_2, %c0_3] : memref<16x128xf32, #tpu.memory_space<vmem>>, vector<16x128xf32>
    %c0_4 = arith.constant 0 : index
    %c0_5 = arith.constant 0 : index
    %5 = vector.load %arg4[%c0_4, %c0_5] : memref<256x128xf32, #tpu.memory_space<vmem>>, vector<256x128xf32>
    %cst = arith.constant dense<0.000000e+00> : vector<16x128xf32>
    %6 = tpu.matmul %3, %5, %cst {dimension_numbers = #tpu.dot_dimension_numbers<[1], [0], [0], [1], [0, 0, 1, 1], [], []>} : vector<16x256xf32>, vector<256x128xf32>, vector<16x128xf32> -> vector<16x128xf32>
    %7 = arith.addf %4, %6 : vector<16x128xf32>
    %c0_6 = arith.constant 0 : index
    %c0_7 = arith.constant 0 : index
    %8 = vector.load %arg6[%c0_6, %c0_7] : memref<16x128xf32, #tpu.memory_space<vmem>>, vector<16x128xf32>
    tpu.vector_store %arg6[%c0_6, %c0_7], %7 {strides = array<i32>} : memref<16x128xf32, #tpu.memory_space<vmem>>, vector<16x128xf32>,
    %c0_i32_8 = arith.constant 0 : i32
    %9 = arith.cmpi eq, %arg2, %c0_i32_8 : i32
    %10 = arith.extui %9 : i1 to i32
    %c0_i32_9 = arith.constant 0 : i32
    %11 = arith.cmpi ne, %10, %c0_i32_9 : i32
    scf.if %11 {
      %c0_10 = arith.constant 0 : index
      %c0_11 = arith.constant 0 : index
      %12 = vector.load %arg6[%c0_10, %c0_11] : memref<16x128xf32, #tpu.memory_space<vmem>>, vector<16x128xf32>
      %c0_12 = arith.constant 0 : index
      %c0_13 = arith.constant 0 : index
      %13 = vector.load %arg5[%c0_12, %c0_13] : memref<1x128xf32, #tpu.memory_space<vmem>>, vector<1x128xf32>
      %14 = vector.broadcast %13 : vector<1x128xf32> to vector<16x128xf32>
      %15 = arith.addf %12, %14 : vector<16x128xf32>
      %c0_14 = arith.constant 0 : index
      %c0_15 = arith.constant 0 : index
      %16 = vector.load %arg6[%c0_14, %c0_15] : memref<16x128xf32, #tpu.memory_space<vmem>>, vector<16x128xf32>
      tpu.vector_store %arg6[%c0_14, %c0_15], %15 {strides = array<i32>} : memref<16x128xf32, #tpu.memory_space<vmem>>, vector<16x128xf32>,
    } else {
    }
    return
  }
  func.func @transform_0(%arg0: i32, %arg1: i32, %arg2: i32) -> (i32, i32) {
    %c0_i32 = arith.constant 0 : i32
    return %arg0, %arg2 : i32, i32
  }
  func.func @transform_1(%arg0: i32, %arg1: i32, %arg2: i32) -> (i32, i32) {
    %c0_i32 = arith.constant 0 : i32
    return %arg2, %arg1 : i32, i32
  }
  func.func @transform_2(%arg0: i32, %arg1: i32, %arg2: i32) -> (i32, i32) {
    %c0_i32 = arith.constant 0 : i32
    %c0_i32_0 = arith.constant 0 : i32
    return %c0_i32, %arg1 : i32, i32
  }
  func.func @transform_3(%arg0: i32, %arg1: i32, %arg2: i32) -> (i32, i32) {
    %c0_i32 = arith.constant 0 : i32
    return %arg0, %arg1 : i32, i32
  }
}

</mosaic_0001>

<llo_original>
// kernel: tpu_custom_call.1
$region0: #{tpu_custom_call.1}
  #allocation0 [shape = 'u32[]', space=smem, size = 0x4, offset = 0x4, fixed_abs, tag = 'smem constant byte address 0x4 - core index']
  #allocation1 [shape = 'u32[72,128]{1,0:T(1,128)}', space=vmem, size = 0x9000, scoped, tag = 'internal scratch']
  %s0 = inlined_call_operand.hbm [shape: f32[16,256], index: 0, kind: input, shape index: {}]
  %s1 = inlined_call_operand.hbm [shape: f32[256,128], index: 1, kind: input, shape index: {}]
  %s2 = inlined_call_operand.vmem [shape: f32[1,128], index: 2, kind: input, shape index: {}]
  %s3 = inlined_call_operand.hbm [shape: f32[16,128], index: 3, kind: output, shape index: {}]
  %s4 = sld [smem:[#allocation0]]
  $region38: #{tpu_custom_call.1} parent=0
    _
  %s6 = ssub.s32 1, %s4
  %s7 = scalar_select 0, %s6, %s4
  $region1: #{tpu_custom_call.1} parent=0
    #allocation2 [shape = 'u8[16384]{0}', space=vmem, size = 0x4000, scoped, tag = 'input window, operand 0, single buffered']
    #allocation3 [shape = 's32[1]{0}', space=sflag, size = 0x4, scoped, tag = 'scoped memory for tpu_custom_call.1']
    #allocation4 [shape = 's32[1]{0}', space=sflag, size = 0x4, scoped, tag = 'scoped memory for tpu_custom_call.1']
    #allocation5 [shape = 'u8[131072]{0}', space=vmem, size = 0x20000, scoped, tag = 'input window, operand 1, single buffered']
    #allocation6 [shape = 's32[1]{0}', space=sflag, size = 0x4, scoped, tag = 'scoped memory for tpu_custom_call.1']
    #allocation7 [shape = 'u8[8192]{0}', space=vmem, size = 0x2000, scoped, tag = 'output window, operand 0, single buffered']
    %8 = vsyncpa [#allocation3], 0
    %9 = vsyncpa [#allocation6], 0
    %10 = vsyncpa [#allocation4], 0
    // Predicated region
    $region2: #{tpu_custom_call.1} parent=1 // pred_check
      _
    $region3: #{tpu_custom_call.1} parent=1 // pred_check_branch
      %12 = sbr.rel (0) target = $region5
    $region4: #{tpu_custom_call.1} parent=1 // pred_region
      %14 = vsyncadd [#allocation3], 0
      %s15 = sshll.u32 %s0, 4
      %s16 = int_to_ptr.hbm [resolvable:$true] %s15
      %s17 = sshll.u32 [#allocation2], 4
      %s18 = int_to_ptr.vmem [resolvable:$true] %s17
      %23 = dma.hbm_to_vmem [thread:$0]  %s16, 512, %s18, [#allocation3], 256, 256, 16
    $region5: #{tpu_custom_call.1} parent=1 // pred_fallthru
      _
    // Predicated region
    $region6: #{tpu_custom_call.1} parent=1 // pred_check
      _
    $region7: #{tpu_custom_call.1} parent=1 // pred_check_branch
      %25 = sbr.rel (0) target = $region9
    $region8: #{tpu_custom_call.1} parent=1 // pred_region
      %27 = vsyncadd [#allocation6], 0
      %s28 = sshll.u32 %s1, 4
      %s29 = int_to_ptr.hbm [resolvable:$true] %s28
      %s30 = sshll.u32 [#allocation5], 4
      %s31 = int_to_ptr.vmem [resolvable:$true] %s30
      %36 = dma.hbm_to_vmem [thread:$0]  %s29, 4096, %s31, [#allocation6], 128, 128, 8
    $region9: #{tpu_custom_call.1} parent=1 // pred_fallthru
      _
    // Predicated region
    $region10: #{tpu_custom_call.1} parent=1 // pred_check
      _
    $region11: #{tpu_custom_call.1} parent=1 // pred_check_branch
      %38 = sbr.rel (0) target = $region13
    $region12: #{tpu_custom_call.1} parent=1 // pred_region
      _
    $region13: #{tpu_custom_call.1} parent=1 // pred_fallthru
      _
    // Predicated region
    $region14: #{tpu_custom_call.1} parent=1 // pred_check
      _
    $region15: #{tpu_custom_call.1} parent=1 // pred_check_branch
      %40 = sbr.rel (0) target = $region17
    $region16: #{tpu_custom_call.1} parent=1 // pred_region
      %42 = dma.done [#allocation3], 512
    $region17: #{tpu_custom_call.1} parent=1 // pred_fallthru
      _
    // Predicated region
    $region18: #{tpu_custom_call.1} parent=1 // pred_check
      _
    $region19: #{tpu_custom_call.1} parent=1 // pred_check_branch
      %44 = sbr.rel (0) target = $region21
    $region20: #{tpu_custom_call.1} parent=1 // pred_region
      %46 = dma.done [#allocation6], 4096
    $region21: #{tpu_custom_call.1} parent=1 // pred_fallthru
      _
    %p47 = scmp.eq.s32.totalorder 0, 0
    // Predicated region
    $region22: #{tpu_custom_call.1} parent=1 // pred_check
      %p48 = pneg %p47
    $region23: #{tpu_custom_call.1} parent=1 // pred_check_branch
      %50 = sbr.rel (%p48) target = $region25
    $region24: #{tpu_custom_call.1} parent=1 // pred_region
      %51 = vst [vmem:[#allocation7] sm:$0xff] 0.0
      %52 = vst [vmem:[#allocation7 + $0x8] sm:$0xff] 0.0
    $region25: #{tpu_custom_call.1} parent=1 // pred_fallthru
      _
    %v53 = vld [vmem:[#allocation2] sm:$0xff]
    %v54 = vld [vmem:[#allocation2 + $0x8] sm:$0xff]
    %v55 = vld [vmem:[#allocation2 + $0x10] sm:$0xff]
    %v56 = vld [vmem:[#allocation2 + $0x18] sm:$0xff]
    %v57 = vld [vmem:[#allocation7] sm:$0xff]
    %v58 = vld [vmem:[#allocation7 + $0x8] sm:$0xff]
    %v59 = vld [vmem:[#allocation5] sm:$0xff]
    %v60 = vld [vmem:[#allocation5 + $0x8] sm:$0xff]
    %v61 = vld [vmem:[#allocation5 + $0x10] sm:$0xff]
    %v62 = vld [vmem:[#allocation5 + $0x18] sm:$0xff]
    %v63 = vld [vmem:[#allocation5 + $0x20] sm:$0xff]
    %v64 = vld [vmem:[#allocation5 + $0x28] sm:$0xff]
    %v65 = vld [vmem:[#allocation5 + $0x30] sm:$0xff]
    %v66 = vld [vmem:[#allocation5 + $0x38] sm:$0xff]
    %v67 = vld [vmem:[#allocation5 + $0x40] sm:$0xff]
    %v68 = vld [vmem:[#allocation5 + $0x48] sm:$0xff]
    %v69 = vld [vmem:[#allocation5 + $0x50] sm:$0xff]
    %v70 = vld [vmem:[#allocation5 + $0x58] sm:$0xff]
    %v71 = vld [vmem:[#allocation5 + $0x60] sm:$0xff]
    %v72 = vld [vmem:[#allocation5 + $0x68] sm:$0xff]
    %v73 = vld [vmem:[#allocation5 + $0x70] sm:$0xff]
    %v74 = vld [vmem:[#allocation5 + $0x78] sm:$0xff]
    %v75 = vld [vmem:[#allocation5 + $0x80] sm:$0xff]
    %v76 = vld [vmem:[#allocation5 + $0x88] sm:$0xff]
    %v77 = vld [vmem:[#allocation5 + $0x90] sm:$0xff]
    %v78 = vld [vmem:[#allocation5 + $0x98] sm:$0xff]
    %v79 = vld [vmem:[#allocation5 + $0xa0] sm:$0xff]
    %v80 = vld [vmem:[#allocation5 + $0xa8] sm:$0xff]
    %v81 = vld [vmem:[#allocation5 + $0xb0] sm:$0xff]
    %v82 = vld [vmem:[#allocation5 + $0xb8] sm:$0xff]
    %v83 = vld [vmem:[#allocation5 + $0xc0] sm:$0xff]
    %v84 = vld [vmem:[#allocation5 + $0xc8] sm:$0xff]
    %v85 = vld [vmem:[#allocation5 + $0xd0] sm:$0xff]
    %v86 = vld [vmem:[#allocation5 + $0xd8] sm:$0xff]
    %v87 = vld [vmem:[#allocation5 + $0xe0] sm:$0xff]
    %v88 = vld [vmem:[#allocation5 + $0xe8] sm:$0xff]
    %v89 = vld [vmem:[#allocation5 + $0xf0] sm:$0xff]
    %v90 = vld [vmem:[#allocation5 + $0xf8] sm:$0xff]
    %91 = vmatpush.msra.mxu0 %v74
    %92 = vmatpush.msra.mxu0 %v73
    %93 = vmatpush.msra.mxu0 %v72
    %94 = vmatpush.msra.mxu0 %v71
    %95 = vmatpush.msra.mxu0 %v70
    %96 = vmatpush.msra.mxu0 %v69
    %97 = vmatpush.msra.mxu0 %v68
    %98 = vmatpush.msra.mxu0 %v67
    %99 = vmatpush.msra.mxu0 %v66
    %100 = vmatpush.msra.mxu0 %v65
    %101 = vmatpush.msra.mxu0 %v64
    %102 = vmatpush.msra.mxu0 %v63
    %103 = vmatpush.msra.mxu0 %v62
    %104 = vmatpush.msra.mxu0 %v61
    %105 = vmatpush.msra.mxu0 %v60
    %106 = vmatpush.msra.mxu0 %v59
    %107 = vmatmul.f32.gmra.mxu0 %v53
    %v108 = vpop.f32.mrf.mxu0
    %v109 = vadd.f32 0.0, %v108
    %110 = vmatmul.f32.gmra.mxu0 %v55
    %v111 = vpop.f32.mrf.mxu0
    %v112 = vadd.f32 0.0, %v111
    %113 = vdwg.mxu0
    %114 = vmatpush.msra.mxu0 %v90
    %115 = vmatpush.msra.mxu0 %v89
    %116 = vmatpush.msra.mxu0 %v88
    %117 = vmatpush.msra.mxu0 %v87
    %118 = vmatpush.msra.mxu0 %v86
    %119 = vmatpush.msra.mxu0 %v85
    %120 = vmatpush.msra.mxu0 %v84
    %121 = vmatpush.msra.mxu0 %v83
    %122 = vmatpush.msra.mxu0 %v82
    %123 = vmatpush.msra.mxu0 %v81
    %124 = vmatpush.msra.mxu0 %v80
    %125 = vmatpush.msra.mxu0 %v79
    %126 = vmatpush.msra.mxu0 %v78
    %127 = vmatpush.msra.mxu0 %v77
    %128 = vmatpush.msra.mxu0 %v76
    %129 = vmatpush.msra.mxu0 %v75
    %130 = vmatmul.f32.gmra.mxu0 %v54
    %v131 = vpop.f32.mrf.mxu0
    %v132 = vadd.f32 %v109, %v131
    %133 = vmatmul.f32.gmra.mxu0 %v56
    %v134 = vpop.f32.mrf.mxu0
    %v135 = vadd.f32 %v112, %v134
    %136 = vdwg.mxu0
    %v137 = vadd.f32 %v57, %v132
    %v138 = vadd.f32 %v58, %v135
    %139 = vst [vmem:[#allocation7] sm:$0xff] %v137
    %140 = vst [vmem:[#allocation7 + $0x8] sm:$0xff] %v138
    // Predicated region
    $region26: #{tpu_custom_call.1} parent=1 // pred_check
      %p141 = pneg %p47
    $region27: #{tpu_custom_call.1} parent=1 // pred_check_branch
      %143 = sbr.rel (%p141) target = $region29
    $region28: #{tpu_custom_call.1} parent=1 // pred_region
      %v144 = vld [vmem:[#allocation7] sm:$0xff]
      %v145 = vld [vmem:[#allocation7 + $0x8] sm:$0xff]
      %v146 = vld [vmem:[%s2] sm:$0x1]
      %v148 = vperm.slane %v146, 0
      %v150 = vadd.f32 %v144, %v148
      %v151 = vadd.f32 %v145, %v148
      %152 = vst [vmem:[#allocation7] sm:$0xff] %v150
      %153 = vst [vmem:[#allocation7 + $0x8] sm:$0xff] %v151
    $region29: #{tpu_custom_call.1} parent=1 // pred_fallthru
      _
    // Predicated region
    $region30: #{tpu_custom_call.1} parent=1 // pred_check
      _
    $region31: #{tpu_custom_call.1} parent=1 // pred_check_branch
      %155 = sbr.rel (0) target = $region33
    $region32: #{tpu_custom_call.1} parent=1 // pred_region
      %157 = vsyncadd [#allocation4], 0
      %s158 = sshll.u32 [#allocation7], 4
      %s159 = int_to_ptr.vmem [resolvable:$true] %s158
      %s160 = sshll.u32 %s3, 4
      %s161 = int_to_ptr.hbm [resolvable:$true] %s160
      %166 = dma.vmem_to_hbm [thread:$0]  %s159, 256, %s161, [#allocation4], 128, 128, 8
    $region33: #{tpu_custom_call.1} parent=1 // pred_fallthru
      _
    // Predicated region
    $region34: #{tpu_custom_call.1} parent=1 // pred_check
      _
    $region35: #{tpu_custom_call.1} parent=1 // pred_check_branch
      %168 = sbr.rel (0) target = $region37
    $region36: #{tpu_custom_call.1} parent=1 // pred_region
      %170 = dma.done [#allocation4], 256
    $region37: #{tpu_custom_call.1} parent=1 // pred_fallthru
      _
    %171 = vsyncpa [#allocation3], 1
    %172 = vsyncpa [#allocation6], 1
    %173 = vsyncpa [#allocation4], 1

</llo_original>
